<compile_context>
chip_gen: v7x
topology: tpu7x:2x2x1
jax: 0.10.0
libtpu: 0.0.40
codegen_flags: <defaults>
</compile_context>

<pallas_src>
import jax
import jax.numpy as jnp
from jax.experimental import pallas as pl
from jax.experimental.pallas import tpu as pltpu


def _graymix_kernel(mask_ref, img_ref, out_ref):
    # mask_ref: (rows, W) int8 per-pixel mask block (1 = grayscale this pixel)
    # img_ref / out_ref: (3, rows, W) image block
    x = img_ref[...].astype(jnp.float32)
    # torchvision rgb_to_grayscale weights; num_output_channels=3 replicates
    # the luminance back into every channel.
    gray = 0.2989 * x[0] + 0.587 * x[1] + 0.114 * x[2]          # (rows, W)
    m = mask_ref[...].astype(jnp.int32) != 0                    # (rows, W) bool
    out_ref[...] = jnp.where(m[None], gray[None], x).astype(out_ref.dtype)


def _choose_rows(h, w_pad, itemsize):
    """Rows per grid step: big slabs, VMEM-safe on v7x, >=2 steps if possible."""
    budget = 40 * 1024 * 1024                       # conservative vs v7x 64 MiB VMEM
    # double-buffered (in + out) image blocks + double-buffered int8 mask block
    bytes_per_row = 2 * (2 * 3 * itemsize + 1) * w_pad
    cap = min(h, max(32, budget // bytes_per_row), 1024)
    if h >= 64:
        cap = min(cap, max(32, h // 2))             # keep >=2 steps (v7x megacore)
    for r in range(cap, 31, -1):
        # multiple of 32 sublanes satisfies f32 (8), bf16 (16) and int8 (32) tiling
        if h % r == 0 and r % 32 == 0:
            return r
    return h                                        # full-dim block is always legal


def graymix(img, mask, patch_size=16):
    """img: (3, H, W) float; mask: int array (numx*numy,), 1 = grayscale that patch."""
    c, h, w = img.shape
    assert c == 3, "GrayMix expects an RGB image (3, H, W)"
    assert h % patch_size == 0 and w % patch_size == 0, (
        "H and W must be multiples of patch_size")
    numx, numy = h // patch_size, w // patch_size

    # Lane-/pixel-expanded mask (wrapper-side XLA; cheap vs. image traffic).
    m2d = mask.reshape(numx, numy).astype(jnp.int8)
    pix = jnp.repeat(jnp.repeat(m2d, patch_size, axis=0), patch_size, axis=1)  # (H, W)

    # Pad W to a multiple of 128 so stores are unmasked / lane-dense.
    w_pad = ((w + 127) // 128) * 128
    if w_pad != w:
        img_in = jnp.pad(img, ((0, 0), (0, 0), (0, w_pad - w)))
        pix = jnp.pad(pix, ((0, 0), (0, w_pad - w)))
    else:
        img_in = img

    rows = _choose_rows(h, w_pad, jnp.dtype(img.dtype).itemsize)
    grid = (h // rows,)

    out = pl.pallas_call(
        _graymix_kernel,
        out_shape=jax.ShapeDtypeStruct((c, h, w_pad), img.dtype),
        grid=grid,
        in_specs=[
            pl.BlockSpec((rows, w_pad), lambda i: (i, 0)),        # pixel mask
            pl.BlockSpec((3, rows, w_pad), lambda i: (0, i, 0)),  # image
        ],
        out_specs=pl.BlockSpec((3, rows, w_pad), lambda i: (0, i, 0)),
        compiler_params=pltpu.CompilerParams(
            dimension_semantics=("parallel",),
            vmem_limit_bytes=64 * 1024 * 1024,
        ),
    )(pix, img_in)

    return out[:, :, :w] if w_pad != w else out


def _ref_graymix(img, mask, patch_size):
    """Pure-JAX reference reproducing the PyTorch forward semantics."""
    c, h, w = img.shape
    numx, numy = h // patch_size, w // patch_size
    r = img[0].astype(jnp.float32)
    g = img[1].astype(jnp.float32)
    b = img[2].astype(jnp.float32)
    gray = 0.2989 * r + 0.587 * g + 0.114 * b
    m2d = mask.reshape(numx, numy).astype(bool)
    pixm = jnp.repeat(jnp.repeat(m2d, patch_size, axis=0), patch_size, axis=1)
    return jnp.where(pixm[None], gray[None], img.astype(jnp.float32)).astype(img.dtype)


if __name__ == "__main__":
    patch_size = 16
    prob = 0.7
    C, H, W = 3, 128, 128
    numx, numy = H // patch_size, W // patch_size

    key = jax.random.PRNGKey(0)
    k_img, k_mask = jax.random.split(key)

    img = jax.random.uniform(k_img, (C, H, W), dtype=jnp.float32)
    # torch.rand(numx*numy) < prob  ->  deterministic bernoulli mask here.
    mask = (jax.random.uniform(k_mask, (numx * numy,)) < prob).astype(jnp.int32)

    # float32 path
    out = jax.block_until_ready(graymix(img, mask, patch_size=patch_size))
    ref = _ref_graymix(img, mask, patch_size)
    assert out.shape == (C, H, W) and out.dtype == img.dtype
    assert jnp.allclose(out, ref, atol=1e-6, rtol=1e-6)

    # bf16 end-to-end path (halves HBM traffic on v6e/v7x) -- same kernel.
    img_bf = img.astype(jnp.bfloat16)
    out_bf = jax.block_until_ready(graymix(img_bf, mask, patch_size=patch_size))
    ref_bf = _ref_graymix(img_bf, mask, patch_size)
    assert out_bf.shape == (C, H, W) and out_bf.dtype == jnp.bfloat16
    assert jnp.allclose(out_bf.astype(jnp.float32), ref_bf.astype(jnp.float32),
                        atol=1e-2, rtol=1e-2)

    print("KERNEL_OK")
</pallas_src>

<mosaic_0001>
module attributes {stable_mosaic.version = 11 : i64} {
  func.func @_graymix_kernel(%arg0: i32, %arg1: memref<64x128xi8, #tpu.memory_space<vmem>>, %arg2: memref<3x64x128xf32, #tpu.memory_space<vmem>>, %arg3: memref<3x64x128xf32, #tpu.memory_space<vmem>>) attributes {dimension_semantics = [#tpu.dimension_semantics<parallel>], iteration_bounds = array<i64: 2>, scalar_prefetch = 0 : i64, scratch_operands = 0 : i64, tpu.core_type = #tpu.core_type<tc>, window_params = [{transform_indices = @transform_0, window_bounds = array<i64: 64, 128>}, {transform_indices = @transform_1, window_bounds = array<i64: 3, 64, 128>}, {transform_indices = @transform_2, window_bounds = array<i64: 3, 64, 128>}]} {
    %c0 = arith.constant 0 : index
    %c0_0 = arith.constant 0 : index
    %c0_1 = arith.constant 0 : index
    %0 = vector.load %arg2[%c0, %c0_0, %c0_1] : memref<3x64x128xf32, #tpu.memory_space<vmem>>, vector<3x64x128xf32>
    %1 = vector.extract_strided_slice %0 {offsets = [0, 0, 0], sizes = [1, 64, 128], strides = [1, 1, 1]} : vector<3x64x128xf32> to vector<1x64x128xf32>
    %2 = vector.shape_cast %1 : vector<1x64x128xf32> to vector<64x128xf32>
    %cst = arith.constant 2.989000e-01 : f32
    %3 = vector.broadcast %cst : f32 to vector<64x128xf32>
    %4 = arith.mulf %3, %2 : vector<64x128xf32>
    %5 = vector.extract_strided_slice %0 {offsets = [1, 0, 0], sizes = [1, 64, 128], strides = [1, 1, 1]} : vector<3x64x128xf32> to vector<1x64x128xf32>
    %6 = vector.shape_cast %5 : vector<1x64x128xf32> to vector<64x128xf32>
    %cst_2 = arith.constant 5.870000e-01 : f32
    %7 = vector.broadcast %cst_2 : f32 to vector<64x128xf32>
    %8 = arith.mulf %7, %6 : vector<64x128xf32>
    %9 = arith.addf %4, %8 : vector<64x128xf32>
    %10 = vector.extract_strided_slice %0 {offsets = [2, 0, 0], sizes = [1, 64, 128], strides = [1, 1, 1]} : vector<3x64x128xf32> to vector<1x64x128xf32>
    %11 = vector.shape_cast %10 : vector<1x64x128xf32> to vector<64x128xf32>
    %cst_3 = arith.constant 1.140000e-01 : f32
    %12 = vector.broadcast %cst_3 : f32 to vector<64x128xf32>
    %13 = arith.mulf %12, %11 : vector<64x128xf32>
    %14 = arith.addf %9, %13 : vector<64x128xf32>
    %c0_4 = arith.constant 0 : index
    %c0_5 = arith.constant 0 : index
    %15 = vector.load %arg1[%c0_4, %c0_5] : memref<64x128xi8, #tpu.memory_space<vmem>>, vector<64x128xi8>
    %16 = arith.extsi %15 : vector<64x128xi8> to vector<64x128xi32>
    %c0_i32 = arith.constant 0 : i32
    %17 = vector.broadcast %c0_i32 : i32 to vector<64x128xi32>
    %18 = arith.cmpi ne, %16, %17 : vector<64x128xi32>
    %19 = vector.shape_cast %18 : vector<64x128xi1> to vector<1x64x128xi1>
    %20 = vector.shape_cast %14 : vector<64x128xf32> to vector<1x64x128xf32>
    %21 = vector.shape_cast %19 : vector<1x64x128xi1> to vector<1x64x128xi1>
    %22 = vector.broadcast %21 : vector<1x64x128xi1> to vector<3x64x128xi1>
    %23 = vector.shape_cast %20 : vector<1x64x128xf32> to vector<1x64x128xf32>
    %24 = vector.broadcast %23 : vector<1x64x128xf32> to vector<3x64x128xf32>
    %25 = arith.select %22, %24, %0 : vector<3x64x128xi1>, vector<3x64x128xf32>
    %c0_6 = arith.constant 0 : index
    %c0_7 = arith.constant 0 : index
    %c0_8 = arith.constant 0 : index
    %26 = vector.load %arg3[%c0_6, %c0_7, %c0_8] : memref<3x64x128xf32, #tpu.memory_space<vmem>>, vector<3x64x128xf32>
    tpu.vector_store %arg3[%c0_6, %c0_7, %c0_8], %25 {strides = array<i32>} : memref<3x64x128xf32, #tpu.memory_space<vmem>>, vector<3x64x128xf32>,
    return
  }
  func.func @transform_0(%arg0: i32) -> (i32, i32) {
    %c0_i32 = arith.constant 0 : i32
    %c0_i32_0 = arith.constant 0 : i32
    return %arg0, %c0_i32 : i32, i32
  }
  func.func @transform_1(%arg0: i32) -> (i32, i32, i32) {
    %c0_i32 = arith.constant 0 : i32
    %c0_i32_0 = arith.constant 0 : i32
    %c0_i32_1 = arith.constant 0 : i32
    return %c0_i32, %arg0, %c0_i32_0 : i32, i32, i32
  }
  func.func @transform_2(%arg0: i32) -> (i32, i32, i32) {
    %c0_i32 = arith.constant 0 : i32
    %c0_i32_0 = arith.constant 0 : i32
    %c0_i32_1 = arith.constant 0 : i32
    return %c0_i32, %arg0, %c0_i32_0 : i32, i32, i32
  }
}

</mosaic_0001>

<llo_original>
// kernel: tpu_custom_call.1
$region0: #{tpu_custom_call.1}
  #allocation0 [shape = 'u32[]', space=smem, size = 0x4, offset = 0x4, fixed_abs, tag = 'smem constant byte address 0x4 - core index']
  #allocation1 [shape = 'u32[144,128]{1,0:T(1,128)}', space=vmem, size = 0x12000, scoped, tag = 'internal scratch']
  #allocation8 [shape = 's32[]', space=sflag, size = 0x4, offset = 0, fixed_abs, tag = 'sflag constant byte address 0x0 - dummy sync flag']
  #allocation10 [shape = 's32[]', space=sflag, size = 0x4, offset = 0, fixed_abs, tag = 'sflag constant byte address 0x0 - dummy sync flag']
  %s0 = inlined_call_operand.hbm [shape: s8[128,128], index: 0, kind: input, shape index: {}]
  %s1 = inlined_call_operand.hbm [shape: f32[3,128,128], index: 1, kind: input, shape index: {}]
  %s2 = inlined_call_operand.hbm [shape: f32[3,128,128], index: 2, kind: output, shape index: {}]
  %s3 = sld [smem:[#allocation0]]
  $region49: #{tpu_custom_call.1} parent=0
    _
  %s5 = ssub.s32 1, %s3
  %s6 = scalar_select 0, %s5, %s3
  $region1: #{tpu_custom_call.1} parent=0
    #allocation2 [shape = 'u8[16384]{0}', space=vmem, size = 0x4000, scoped, tag = 'input window, operand 0']
    #allocation3 [shape = 's32[2]{0}', space=sflag, size = 0x8, scoped, tag = 'scoped memory for tpu_custom_call.1']
    #allocation4 [shape = 's32[2]{0}', space=sflag, size = 0x8, scoped, tag = 'scoped memory for tpu_custom_call.1']
    #allocation5 [shape = 'u8[196608]{0}', space=vmem, size = 0x30000, scoped, tag = 'input window, operand 1']
    #allocation6 [shape = 's32[2]{0}', space=sflag, size = 0x8, scoped, tag = 'scoped memory for tpu_custom_call.1']
    #allocation7 [shape = 'u8[196608]{0}', space=vmem, size = 0x30000, scoped, tag = 'output window, operand 0']
    %7 = vsyncpa [#allocation3], 0
    %s8 = scalar_lea.sflag [#allocation3], 1
    %9 = vsyncpa %s8, 0
    %10 = vsyncpa [#allocation6], 0
    %s11 = scalar_lea.sflag [#allocation6], 1
    %12 = vsyncpa %s11, 0
    %13 = vsyncpa [#allocation4], 0
    %s14 = scalar_lea.sflag [#allocation4], 1
    %15 = vsyncpa %s14, 0
    loop: start=0, step=1, limit=4
    $region2: #{tpu_custom_call.1} parent=1 // loop_pre_header
      _
    $region3: #{tpu_custom_call.1} parent=1 // loop_header
      %s17 = sphi 0, %s21
      %p18 = scmp.ge.s32.totalorder %s17, 4
      %s27 = sphi 0, %s29
      %s30 = sphi 0, %s27
      %s31 = sphi 0, %s30
      %s47 = sphi 0, %s31
      %s53 = sphi 0, %s55
      %s56 = sphi 0, %s53
      %s57 = sphi 0, %s56
      %s73 = sphi 0, %s57
      %s79 = sphi 0, %s81
      %s82 = sphi 0, %s79
      %s83 = sphi 0, %s82
      %s99 = sphi 0, %s83
    $region4: #{tpu_custom_call.1} parent=1 // loop_header_branch
      %20 = sbr.rel (%p18) target = $region8
    $region5: #{tpu_custom_call.1} parent=1 // loop_body
      %s22 = ssub.s32 %s17, 1
      %s23 = ssub.s32 %s17, 2
      %s24 = sadd.s32 %s17, 1
      %s25 = ssub.s32 %s17, %s24
      %p26 = scmp.eq.s32.totalorder %s25, 0
      %s28 = sadd.s32 %s27, 1
      %s29 = scalar_select %p26, %s27, %s28
      %p32 = pneg %p26
      %p33 = scmp.eq.s32.totalorder %s17, 1
      %p34 = por %p32, %p33
      %p35 = scmp.ne.s32.totalorder %s27, %s30
      %p36 = scmp.eq.s32.totalorder %s17, 0
      %p37 = por %p35, %p36
      %p38 = scmp.ne.s32.totalorder %s27, %s30
      %p39 = scmp.eq.s32.totalorder %s22, 1
      %p40 = por %p38, %p39
      %p41 = scmp.ne.s32.totalorder %s30, %s31
      %p42 = scmp.eq.s32.totalorder %s22, 0
      %p43 = por %p41, %p42
      %p44 = scmp.ne.s32.totalorder %s30, %s31
      %p45 = scmp.eq.s32.totalorder %s23, 1
      %p46 = por %p44, %p45
      %p48 = scmp.ne.s32.totalorder %s31, %s47
      %p49 = scmp.eq.s32.totalorder %s23, 0
      %p50 = por %p48, %p49
      %s51 = ssub.s32 %s17, %s24
      %p52 = scmp.eq.s32.totalorder %s51, 0
      %s54 = sadd.s32 %s53, 1
      %s55 = scalar_select %p52, %s53, %s54
      %p58 = pneg %p52
      %p59 = scmp.eq.s32.totalorder %s17, 1
      %p60 = por %p58, %p59
      %p61 = scmp.ne.s32.totalorder %s53, %s56
      %p62 = scmp.eq.s32.totalorder %s17, 0
      %p63 = por %p61, %p62
      %p64 = scmp.ne.s32.totalorder %s53, %s56
      %p65 = scmp.eq.s32.totalorder %s22, 1
      %p66 = por %p64, %p65
      %p67 = scmp.ne.s32.totalorder %s56, %s57
      %p68 = scmp.eq.s32.totalorder %s22, 0
      %p69 = por %p67, %p68
      %p70 = scmp.ne.s32.totalorder %s56, %s57
      %p71 = scmp.eq.s32.totalorder %s23, 1
      %p72 = por %p70, %p71
      %p74 = scmp.ne.s32.totalorder %s57, %s73
      %p75 = scmp.eq.s32.totalorder %s23, 0
      %p76 = por %p74, %p75
      %s77 = ssub.s32 %s17, %s24
      %p78 = scmp.eq.s32.totalorder %s77, 0
      %s80 = sadd.s32 %s79, 1
      %s81 = scalar_select %p78, %s79, %s80
      %p84 = pneg %p78
      %p85 = scmp.eq.s32.totalorder %s17, 1
      %p86 = por %p84, %p85
      %p87 = scmp.ne.s32.totalorder %s79, %s82
      %p88 = scmp.eq.s32.totalorder %s17, 0
      %p89 = por %p87, %p88
      %p90 = scmp.ne.s32.totalorder %s79, %s82
      %p91 = scmp.eq.s32.totalorder %s22, 1
      %p92 = por %p90, %p91
      %p93 = scmp.ne.s32.totalorder %s82, %s83
      %p94 = scmp.eq.s32.totalorder %s22, 0
      %p95 = por %p93, %p94
      %p96 = scmp.ne.s32.totalorder %s82, %s83
      %p97 = scmp.eq.s32.totalorder %s23, 1
      %p98 = por %p96, %p97
      %p100 = scmp.ne.s32.totalorder %s83, %s99
      %p101 = scmp.eq.s32.totalorder %s23, 0
      %p102 = por %p100, %p101
      %p103 = scmp.le.s32.totalorder 1, %s17
      %p104 = scmp.lt.s32.totalorder %s17, 3
      %p105 = pnand %p103, %p104
      %p106 = pneg %p105
      // Predicated region
      $region9: #{tpu_custom_call.1} parent=5 // pred_check
        _
      $region10: #{tpu_custom_call.1} parent=5 // pred_check_branch
        %108 = sbr.rel (%p105) target = $region12
      $region11: #{tpu_custom_call.1} parent=5 // pred_region
        %s109 = ssub.s32 %s17, 1
      $region12: #{tpu_custom_call.1} parent=5 // pred_fallthru
        _
      %p110 = scmp.lt.s32.totalorder %s17, 2
      // Predicated region
      $region13: #{tpu_custom_call.1} parent=5 // pred_check
        %p111 = pneg %p110
      $region14: #{tpu_custom_call.1} parent=5 // pred_check_branch
        %113 = sbr.rel (%p111) target = $region16
      $region15: #{tpu_custom_call.1} parent=5 // pred_region
        // Predicated region
        $region17: #{tpu_custom_call.1} parent=15 // pred_check
          %p114 = pneg %p37
        $region18: #{tpu_custom_call.1} parent=15 // pred_check_branch
          %116 = sbr.rel (%p114) target = $region20
        $region19: #{tpu_custom_call.1} parent=15 // pred_region
          %s117 = sand.u32 %s27, 1
          %s118 = scalar_lea.sflag [#allocation3], %s117
          %s119 = sand.u32 %s27, 1
          %s120 = smul.addr %s119, 16
          %s121 = scalar_lea.vmem [#allocation2], %s120
          %s122 = smul.u32 2, %s17
          %s124 = ssub.s32 256, 256
          %125 = vsyncadd %s118, %s124
          %s126 = smul.addr %s122, 128
          %s127 = scalar_lea.hbm %s0, %s126
          %s128 = sshll.u32 %s121, 4
          %s129 = int_to_ptr.vmem [resolvable:$true] %s128
          %134 = dma.hbm_to_vmem [thread:$0]  %s127, 256, %s129, %s118, 128, 128, 8
        $region20: #{tpu_custom_call.1} parent=15 // pred_fallthru
          _
        // Predicated region
        $region21: #{tpu_custom_call.1} parent=15 // pred_check
          %p135 = pneg %p63
        $region22: #{tpu_custom_call.1} parent=15 // pred_check_branch
          %137 = sbr.rel (%p135) target = $region24
        $region23: #{tpu_custom_call.1} parent=15 // pred_region
          #allocation9 [shape = 'u32[6]{0}', space=smem, size = 0x18, scoped, tag = 'DMA stride descriptor']
          %s138 = sand.u32 %s53, 1
          %s139 = scalar_lea.sflag [#allocation6], %s138
          %s140 = sand.u32 %s53, 1
          %s141 = smul.addr %s140, 192
          %s142 = scalar_lea.vmem [#allocation5], %s141
          %s143 = smul.u32 8, %s17
          %s145 = ssub.s32 3072, 3072
          %146 = vsyncadd %s139, %s145
          %s147 = smul.addr %s143, 128
          %s148 = scalar_lea.hbm %s1, %s147
          %s150 = sshll.u32 1, 14
          %s151 = sxor.u32 4294967295, %s150
          %s153 = sld [smem:[#allocation0]]
          %s154 = sadd.s32 2, %s153
          %s156 = sshll.u32 7, 26
          %s157 = sxor.u32 4294967295, %s156
          %s158 = sand.u32 0, %s157
          %s159 = sshll.u32 %s154, 26
          %s160 = sor.u32 %s158, %s159
          %s161 = sshll.u32 %s142, 4
          %s162 = int_to_ptr.vmem [resolvable:$true] %s161
          %168 = sst [smem:[#allocation9]] 2048
          %s169 = scalar_lea.smem [#allocation9], 1
          %170 = sst [smem:[%s169]] 1024
          %s171 = scalar_lea.smem [#allocation9], 2
          %172 = sst [smem:[%s171]] 8
          %s173 = scalar_lea.smem [#allocation9], 3
          %174 = sst [smem:[%s173]] 128
          %s175 = scalar_lea.smem [#allocation9], 4
          %176 = sst [smem:[%s175]] 128
          %s177 = scalar_lea.smem [#allocation9], 5
          %178 = sst [smem:[%s177]] 8
          %180 = dma.general %s148, 3072, %s162, %s139, [#allocation8], [#allocation9], %s160, 0
        $region24: #{tpu_custom_call.1} parent=15 // pred_fallthru
          _
      $region16: #{tpu_custom_call.1} parent=5 // pred_fallthru
        _
      %p181 = scmp.le.s32.totalorder 1, %s17
      %p182 = scmp.lt.s32.totalorder %s17, 3
      %p183 = pnand %p181, %p182
      %p184 = pneg %p183
      // Predicated region
      $region25: #{tpu_custom_call.1} parent=5 // pred_check
        _
      $region26: #{tpu_custom_call.1} parent=5 // pred_check_branch
        %186 = sbr.rel (%p183) target = $region28
      $region27: #{tpu_custom_call.1} parent=5 // pred_region
        %s187 = ssub.s32 %s17, 1
        %s188 = sand.u32 %s30, 1
        %s189 = scalar_lea.sflag [#allocation3], %s188
        %s190 = sand.u32 %s30, 1
        %s191 = smul.addr %s190, 16
        %s192 = scalar_lea.vmem [#allocation2], %s191
        // Predicated region
        $region29: #{tpu_custom_call.1} parent=27 // pred_check
          %p193 = pneg %p43
        $region30: #{tpu_custom_call.1} parent=27 // pred_check_branch
          %195 = sbr.rel (%p193) target = $region32
        $region31: #{tpu_custom_call.1} parent=27 // pred_region
          %196 = dma.done %s189, 256
        $region32: #{tpu_custom_call.1} parent=27 // pred_fallthru
          _
        %s197 = sand.u32 %s56, 1
        %s198 = scalar_lea.sflag [#allocation6], %s197
        %s199 = sand.u32 %s56, 1
        %s200 = smul.addr %s199, 192
        %s201 = scalar_lea.vmem [#allocation5], %s200
        // Predicated region
        $region33: #{tpu_custom_call.1} parent=27 // pred_check
          %p202 = pneg %p69
        $region34: #{tpu_custom_call.1} parent=27 // pred_check_branch
          %204 = sbr.rel (%p202) target = $region36
        $region35: #{tpu_custom_call.1} parent=27 // pred_region
          %205 = dma.done %s198, 3072
        $region36: #{tpu_custom_call.1} parent=27 // pred_fallthru
          _
        %s206 = sand.u32 %s30, 1
        %s207 = scalar_lea.sflag [#allocation3], %s206
        %s208 = sand.u32 %s30, 1
        %s209 = smul.addr %s208, 16
        %s210 = scalar_lea.vmem [#allocation2], %s209
        %p211 = pneg %p43
        %p212 = pneg %p40
        %s213 = sand.u32 %s56, 1
        %s214 = scalar_lea.sflag [#allocation6], %s213
        %s215 = sand.u32 %s56, 1
        %s216 = smul.addr %s215, 192
        %s217 = scalar_lea.vmem [#allocation5], %s216
        %p218 = pneg %p69
        %p219 = pneg %p66
        %p220 = pneg %p95
        %p221 = pneg %p92
        %s222 = sand.u32 %s82, 1
        %s223 = scalar_lea.sflag [#allocation4], %s222
        %s224 = sand.u32 %s82, 1
        %s225 = smul.addr %s224, 192
        %s226 = scalar_lea.vmem [#allocation7], %s225
        %s227 = smul.u32 2, %s22
        %s228 = smul.u32 8, %s22
        %s229 = smul.u32 8, %s22
        %v230 = vld [vmem:[%s201] sm:$0xff]
        %v231 = vld [vmem:[%s201 + $0x8] sm:$0xff]
        %v232 = vld [vmem:[%s201 + $0x10] sm:$0xff]
        %v233 = vld [vmem:[%s201 + $0x18] sm:$0xff]
        %v234 = vld [vmem:[%s201 + $0x20] sm:$0xff]
        %v235 = vld [vmem:[%s201 + $0x28] sm:$0xff]
        %v236 = vld [vmem:[%s201 + $0x30] sm:$0xff]
        %v237 = vld [vmem:[%s201 + $0x38] sm:$0xff]
        %v238 = vld [vmem:[%s201 + $0x40] sm:$0xff]
        %v239 = vld [vmem:[%s201 + $0x48] sm:$0xff]
        %v240 = vld [vmem:[%s201 + $0x50] sm:$0xff]
        %v241 = vld [vmem:[%s201 + $0x58] sm:$0xff]
        %v242 = vld [vmem:[%s201 + $0x60] sm:$0xff]
        %v243 = vld [vmem:[%s201 + $0x68] sm:$0xff]
        %v244 = vld [vmem:[%s201 + $0x70] sm:$0xff]
        %v245 = vld [vmem:[%s201 + $0x78] sm:$0xff]
        %v246 = vld [vmem:[%s201 + $0x80] sm:$0xff]
        %v247 = vld [vmem:[%s201 + $0x88] sm:$0xff]
        %v248 = vld [vmem:[%s201 + $0x90] sm:$0xff]
        %v249 = vld [vmem:[%s201 + $0x98] sm:$0xff]
        %v250 = vld [vmem:[%s201 + $0xa0] sm:$0xff]
        %v251 = vld [vmem:[%s201 + $0xa8] sm:$0xff]
        %v252 = vld [vmem:[%s201 + $0xb0] sm:$0xff]
        %v253 = vld [vmem:[%s201 + $0xb8] sm:$0xff]
        %v254 = vmul.f32 %v230, 0.2989
        %v255 = vmul.f32 %v231, 0.2989
        %v256 = vmul.f32 %v232, 0.2989
        %v257 = vmul.f32 %v233, 0.2989
        %v258 = vmul.f32 %v234, 0.2989
        %v259 = vmul.f32 %v235, 0.2989
        %v260 = vmul.f32 %v236, 0.2989
        %v261 = vmul.f32 %v237, 0.2989
        %v262 = vmul.f32 %v238, 0.587
        %v263 = vmul.f32 %v239, 0.587
        %v264 = vmul.f32 %v240, 0.587
        %v265 = vmul.f32 %v241, 0.587
        %v266 = vmul.f32 %v242, 0.587
        %v267 = vmul.f32 %v243, 0.587
        %v268 = vmul.f32 %v244, 0.587
        %v269 = vmul.f32 %v245, 0.587
        %v270 = vadd.f32 %v254, %v262
        %v271 = vadd.f32 %v255, %v263
        %v272 = vadd.f32 %v256, %v264
        %v273 = vadd.f32 %v257, %v265
        %v274 = vadd.f32 %v258, %v266
        %v275 = vadd.f32 %v259, %v267
        %v276 = vadd.f32 %v260, %v268
        %v277 = vadd.f32 %v261, %v269
        %v278 = vmul.f32 %v246, 0.114
        %v279 = vmul.f32 %v247, 0.114
        %v280 = vmul.f32 %v248, 0.114
        %v281 = vmul.f32 %v249, 0.114
        %v282 = vmul.f32 %v250, 0.114
        %v283 = vmul.f32 %v251, 0.114
        %v284 = vmul.f32 %v252, 0.114
        %v285 = vmul.f32 %v253, 0.114
        %v286 = vadd.f32 %v270, %v278
        %v287 = vadd.f32 %v271, %v279
        %v288 = vadd.f32 %v272, %v280
        %v289 = vadd.f32 %v273, %v281
        %v290 = vadd.f32 %v274, %v282
        %v291 = vadd.f32 %v275, %v283
        %v292 = vadd.f32 %v276, %v284
        %v293 = vadd.f32 %v277, %v285
        %v294 = vld [vmem:[%s192] sm:$0xff]
        %v295 = vld [vmem:[%s192 + $0x8] sm:$0xff]
        %v296 = vunpack.c.0.s8 %v294
        %v297 = vunpack.c.1.s8 %v294
        %v298 = vunpack.c.2.s8 %v294
        %v299 = vunpack.c.3.s8 %v294
        %v300 = vunpack.c.0.s8 %v295
        %v301 = vunpack.c.1.s8 %v295
        %v302 = vunpack.c.2.s8 %v295
        %v303 = vunpack.c.3.s8 %v295
        %vm304 = vcmp.ne.s32.totalorder %v296, 0
        %vm305 = vcmp.ne.s32.totalorder %v297, 0
        %vm306 = vcmp.ne.s32.totalorder %v298, 0
        %vm307 = vcmp.ne.s32.totalorder %v299, 0
        %vm308 = vcmp.ne.s32.totalorder %v300, 0
        %vm309 = vcmp.ne.s32.totalorder %v301, 0
        %vm310 = vcmp.ne.s32.totalorder %v302, 0
        %vm311 = vcmp.ne.s32.totalorder %v303, 0
        %v312 = vsel %vm304, 1, 0
        %v313 = vsel %vm305, 1, 0
        %v314 = vsel %vm306, 1, 0
        %v315 = vsel %vm307, 1, 0
        %v316 = vsel %vm308, 1, 0
        %v317 = vsel %vm309, 1, 0
        %v318 = vsel %vm310, 1, 0
        %v319 = vsel %vm311, 1, 0
        %vm320 = vcmp.eq.s32.totalorder %v312, 1
        %vm321 = vcmp.eq.s32.totalorder %v313, 1
        %vm322 = vcmp.eq.s32.totalorder %v314, 1
        %vm323 = vcmp.eq.s32.totalorder %v315, 1
        %vm324 = vcmp.eq.s32.totalorder %v316, 1
        %vm325 = vcmp.eq.s32.totalorder %v317, 1
        %vm326 = vcmp.eq.s32.totalorder %v318, 1
        %vm327 = vcmp.eq.s32.totalorder %v319, 1
        %v328 = vsel %vm320, %v286, %v230
        %v329 = vsel %vm321, %v287, %v231
        %v330 = vsel %vm322, %v288, %v232
        %v331 = vsel %vm323, %v289, %v233
        %v332 = vsel %vm324, %v290, %v234
        %v333 = vsel %vm325, %v291, %v235
        %v334 = vsel %vm326, %v292, %v236
        %v335 = vsel %vm327, %v293, %v237
        %v336 = vsel %vm320, %v286, %v238
        %v337 = vsel %vm321, %v287, %v239
        %v338 = vsel %vm322, %v288, %v240
        %v339 = vsel %vm323, %v289, %v241
        %v340 = vsel %vm324, %v290, %v242
        %v341 = vsel %vm325, %v291, %v243
        %v342 = vsel %vm326, %v292, %v244
        %v343 = vsel %vm327, %v293, %v245
        %v344 = vsel %vm320, %v286, %v246
        %v345 = vsel %vm321, %v287, %v247
        %v346 = vsel %vm322, %v288, %v248
        %v347 = vsel %vm323, %v289, %v249
        %v348 = vsel %vm324, %v290, %v250
        %v349 = vsel %vm325, %v291, %v251
        %v350 = vsel %vm326, %v292, %v252
        %v351 = vsel %vm327, %v293, %v253
        %352 = vst [vmem:[%s226] sm:$0xff] %v328
        %353 = vst [vmem:[%s226 + $0x8] sm:$0xff] %v329
        %354 = vst [vmem:[%s226 + $0x10] sm:$0xff] %v330
        %355 = vst [vmem:[%s226 + $0x18] sm:$0xff] %v331
        %356 = vst [vmem:[%s226 + $0x20] sm:$0xff] %v332
        %357 = vst [vmem:[%s226 + $0x28] sm:$0xff] %v333
        %358 = vst [vmem:[%s226 + $0x30] sm:$0xff] %v334
        %359 = vst [vmem:[%s226 + $0x38] sm:$0xff] %v335
        %360 = vst [vmem:[%s226 + $0x40] sm:$0xff] %v336
        %361 = vst [vmem:[%s226 + $0x48] sm:$0xff] %v337
        %362 = vst [vmem:[%s226 + $0x50] sm:$0xff] %v338
        %363 = vst [vmem:[%s226 + $0x58] sm:$0xff] %v339
        %364 = vst [vmem:[%s226 + $0x60] sm:$0xff] %v340
        %365 = vst [vmem:[%s226 + $0x68] sm:$0xff] %v341
        %366 = vst [vmem:[%s226 + $0x70] sm:$0xff] %v342
        %367 = vst [vmem:[%s226 + $0x78] sm:$0xff] %v343
        %368 = vst [vmem:[%s226 + $0x80] sm:$0xff] %v344
        %369 = vst [vmem:[%s226 + $0x88] sm:$0xff] %v345
        %370 = vst [vmem:[%s226 + $0x90] sm:$0xff] %v346
        %371 = vst [vmem:[%s226 + $0x98] sm:$0xff] %v347
        %372 = vst [vmem:[%s226 + $0xa0] sm:$0xff] %v348
        %373 = vst [vmem:[%s226 + $0xa8] sm:$0xff] %v349
        %374 = vst [vmem:[%s226 + $0xb0] sm:$0xff] %v350
        %375 = vst [vmem:[%s226 + $0xb8] sm:$0xff] %v351
        %s376 = sand.u32 %s82, 1
        %s377 = scalar_lea.sflag [#allocation4], %s376
        %s378 = sand.u32 %s82, 1
        %s379 = smul.addr %s378, 192
        %s380 = scalar_lea.vmem [#allocation7], %s379
        // Predicated region
        $region37: #{tpu_custom_call.1} parent=27 // pred_check
          %p381 = pneg %p92
        $region38: #{tpu_custom_call.1} parent=27 // pred_check_branch
          %383 = sbr.rel (%p381) target = $region40
        $region39: #{tpu_custom_call.1} parent=27 // pred_region
          #allocation11 [shape = 'u32[6]{0}', space=smem, size = 0x18, scoped, tag = 'DMA stride descriptor']
          %s384 = smul.u32 8, %s22
          %s386 = ssub.s32 3072, 3072
          %387 = vsyncadd %s377, %s386
          %s388 = smul.addr %s384, 128
          %s389 = scalar_lea.hbm %s2, %s388
          %s391 = sshll.u32 1, 14
          %s392 = sxor.u32 4294967295, %s391
          %s395 = sshll.u32 7, 18
          %s396 = sxor.u32 4294967295, %s395
          %s397 = sand.u32 0, %s396
          %s399 = sor.u32 %s397, 0
          %s401 = sshll.u32 3, 24
          %s402 = sxor.u32 4294967295, %s401
          %s403 = sand.u32 %s399, %s402
          %s405 = sor.u32 %s403, 0
          %s406 = sshll.u32 %s380, 4
          %s407 = int_to_ptr.vmem [resolvable:$true] %s406
          %413 = sst [smem:[#allocation11]] 1024
          %s414 = scalar_lea.smem [#allocation11], 1
          %415 = sst [smem:[%s414]] 2048
          %s416 = scalar_lea.smem [#allocation11], 2
          %417 = sst [smem:[%s416]] 8
          %s418 = scalar_lea.smem [#allocation11], 3
          %419 = sst [smem:[%s418]] 128
          %s420 = scalar_lea.smem [#allocation11], 4
          %421 = sst [smem:[%s420]] 128
          %s422 = scalar_lea.smem [#allocation11], 5
          %423 = sst [smem:[%s422]] 8
          %425 = dma.general %s407, 3072, %s389, %s377, [#allocation10], [#allocation11], %s405, 0
        $region40: #{tpu_custom_call.1} parent=27 // pred_fallthru
          _
      $region28: #{tpu_custom_call.1} parent=5 // pred_fallthru
        _
      %p426 = scmp.le.s32.totalorder 2, %s17
      // Predicated region
      $region41: #{tpu_custom_call.1} parent=5 // pred_check
        %p427 = pneg %p426
      $region42: #{tpu_custom_call.1} parent=5 // pred_check_branch
        %429 = sbr.rel (%p427) target = $region44
      $region43: #{tpu_custom_call.1} parent=5 // pred_region
        %s430 = ssub.s32 %s17, 2
        // Predicated region
        $region45: #{tpu_custom_call.1} parent=43 // pred_check
          %p431 = pneg %p98
        $region46: #{tpu_custom_call.1} parent=43 // pred_check_branch
          %433 = sbr.rel (%p431) target = $region48
        $region47: #{tpu_custom_call.1} parent=43 // pred_region
          %s434 = sand.u32 %s83, 1
          %s435 = scalar_lea.sflag [#allocation4], %s434
          %s436 = sand.u32 %s83, 1
          %s437 = smul.addr %s436, 192
          %s438 = scalar_lea.vmem [#allocation7], %s437
          %439 = dma.done %s435, 3072
        $region48: #{tpu_custom_call.1} parent=43 // pred_fallthru
          _
      $region44: #{tpu_custom_call.1} parent=5 // pred_fallthru
        _
    $region6: #{tpu_custom_call.1} parent=1 // loop_footer
      %s21 = sadd.s32 1, %s17
    $region7: #{tpu_custom_call.1} parent=1 // loop_footer_branch
      %16 = sbr.rel target = $region3
    $region8: #{tpu_custom_call.1} parent=1 // loop_exit
      _
    %440 = vsyncpa [#allocation3], 1
    %s441 = scalar_lea.sflag [#allocation3], 1
    %442 = vsyncpa %s441, 1
    %443 = vsyncpa [#allocation6], 1
    %s444 = scalar_lea.sflag [#allocation6], 1
    %445 = vsyncpa %s444, 1
    %446 = vsyncpa [#allocation4], 1
    %s447 = scalar_lea.sflag [#allocation4], 1
    %448 = vsyncpa %s447, 1

</llo_original>
